<compile_context>
chip_gen: v7x
topology: tpu7x:2x2x1
jax: 0.10.0
libtpu: 0.0.40
codegen_flags: <defaults>
</compile_context>

<pallas_src>
import functools

import jax
import jax.numpy as jnp
from jax.experimental import pallas as pl
from jax.experimental.pallas import tpu as pltpu


# ---------------------------------------------------------------------------
# Hardware-derived budgets
# ---------------------------------------------------------------------------
def _round_up(x, m):
    return ((x + m - 1) // m) * m


def _vmem_capacity_bytes():
    try:
        return int(pltpu.get_tpu_info().vmem_capacity_bytes)
    except Exception:
        return 64 << 20  # conservative fallback (v7x per-TC VMEM)


def _budgets():
    cap = _vmem_capacity_bytes()
    live_budget = cap // 3                       # target for live blocks + temps
    vmem_limit = int(min((cap * 3) // 4, 96 << 20))  # scoped limit handed to Mosaic
    # v7x is the only generation with 64 MiB VMEM per TC and 2 TCs per chip.
    two_tc = cap <= (64 << 20)
    return live_budget, vmem_limit, two_tc


# ---------------------------------------------------------------------------
# Fused kernel: one grid step == Bt full (C, HWp) images of x and x2
# ---------------------------------------------------------------------------
def _fused_kernel(x_ref, x2_ref, w1_ref, w2_ref, xo_ref, x2o_ref, *,
                  pool_is_identity, hw_valid, inv_hw):
    xx = x_ref[...]            # (Bt, C, HWp)  lane-dense
    xx2 = x2_ref[...]          # (Bt, C, HWp)
    w1 = w1_ref[...]           # (C, C//r)  float32 (pre-cast in wrapper)
    w2 = w2_ref[...]           # (C//r, C)  float32
    bt = xx.shape[0]

    # --- shared SE module, both inputs batched through one GEMM chain -------
    # Padded HW columns are zero, so sum is exact; divide by the true HW.
    y = jnp.concatenate([jnp.sum(xx, axis=-1), jnp.sum(xx2, axis=-1)],
                        axis=0).astype(jnp.float32) * inv_hw          # (2*Bt, C)
    h = jnp.maximum(jnp.dot(y, w1, preferred_element_type=jnp.float32), 0.0)
    s = jax.nn.sigmoid(jnp.dot(h, w2, preferred_element_type=jnp.float32))
    s = s.astype(xx.dtype)

    x_se = xx * s[:bt, :, None]                                       # (Bt, C, HWp)
    x2_se = xx2 * s[bt:, :, None]

    # --- adaptive max pool + sigmoid gates -----------------------------------
    if pool_is_identity:                 # (c1, c2) == (H, W): pool is identity
        g1 = jax.nn.sigmoid(x_se)        # gate from x  (applied to x2's output)
        g2 = jax.nn.sigmoid(x2_se)       # gate from x2 (applied to x's output)
    else:                                # (c1, c2) == (1, 1): global max pool
        if hw_valid != xx.shape[-1]:
            # HW was padded with zeros for lane density -> mask pad cols for max.
            lane = jax.lax.broadcasted_iota(jnp.int32, x_se.shape, 2)
            neg = jnp.asarray(jnp.finfo(x_se.dtype).min, dtype=x_se.dtype)
            xm = jnp.where(lane < hw_valid, x_se, neg)
            x2m = jnp.where(lane < hw_valid, x2_se, neg)
        else:
            xm, x2m = x_se, x2_se
        g1 = jax.nn.sigmoid(jnp.max(xm, axis=-1, keepdims=True))      # (Bt, C, 1)
        g2 = jax.nn.sigmoid(jnp.max(x2m, axis=-1, keepdims=True))

    # --- mutual gating + residual --------------------------------------------
    xo_ref[...] = (xx + x_se * g2).astype(xo_ref.dtype)
    x2o_ref[...] = (xx2 + x2_se * g1).astype(x2o_ref.dtype)


# ---------------------------------------------------------------------------
# Streaming fallback kernel: pure elementwise pass over (1, C, Thw) tiles.
# Channel means / maxes and SE MLP are precomputed in the wrapper.
# ---------------------------------------------------------------------------
def _streaming_kernel(x_ref, x2_ref, s1_ref, s2_ref, g1_ref, g2_ref,
                      xo_ref, x2o_ref, *, pool_is_identity):
    xx = x_ref[...]            # (1, C, Thw)
    xx2 = x2_ref[...]
    x_se = xx * s1_ref[...]    # (1, C, 1) broadcast over lanes
    x2_se = xx2 * s2_ref[...]
    if pool_is_identity:
        g1 = jax.nn.sigmoid(x_se)
        g2 = jax.nn.sigmoid(x2_se)
    else:
        g1 = g1_ref[...]       # precomputed sigmoid(global max of x_se)
        g2 = g2_ref[...]
    xo_ref[...] = (xx + x_se * g2).astype(xo_ref.dtype)
    x2o_ref[...] = (xx2 + x2_se * g1).astype(x2o_ref.dtype)


# ---------------------------------------------------------------------------
# Wrapper
# ---------------------------------------------------------------------------
@functools.partial(jax.jit, static_argnames=("c1", "c2", "force_streaming"))
def mutual_attention(x, x2, w1, w2, *, c1, c2, force_streaming=False):
    B, C, H, W = x.shape
    Cr = w1.shape[1]
    HW = H * W

    if (c1, c2) not in ((1, 1), (H, W)):
        # TODO(synk): general AdaptiveMaxPool2d output sizes not supported in-kernel.
        raise NotImplementedError(
            "Pallas MutualAttention supports (c1, c2) in {(1, 1), (H, W)} only")
    pool_is_identity = (c1, c2) == (H, W)

    live_budget, vmem_limit, two_tc = _budgets()
    itemsize = x.dtype.itemsize

    w1f = w1.astype(jnp.float32)          # pre-cast once (no per-step VPU cast)
    w2f = w2.astype(jnp.float32)

    # Lane-dense last dim: pad HW up to a multiple of 128 (unmasked vst).
    HWp = _round_up(HW, 128)
    img_bytes = C * HWp * itemsize
    # Live-set multiplier: 8x pipeline buffers (2 in + 2 out, double-buffered)
    # plus full-size elementwise temporaries; identity pool keeps the most.
    if pool_is_identity:
        live_mult = 18
    else:
        live_mult = 14 if HWp != HW else 12
    bt_cap = live_budget // (live_mult * img_bytes)

    use_streaming = force_streaming or bt_cap < 1

    if not use_streaming:
        # ----------------------- fused single-pass path -----------------------
        if two_tc and B >= 2:
            bt = int(min(bt_cap, -(-B // 2)))   # keep >= 2 steps for the 2 TCs
        else:
            bt = int(min(bt_cap, B))            # 1 TC: biggest block that fits
        steps = -(-B // bt)
        if two_tc and steps > 1 and steps % 2:
            steps += 1                          # even work split across v7x's 2 TCs
        B_pad = steps * bt

        xf = x.reshape(B, C, HW)
        x2f = x2.reshape(B, C, HW)
        if B_pad != B or HWp != HW:
            pad = ((0, B_pad - B), (0, 0), (0, HWp - HW))
            xf = jnp.pad(xf, pad)               # zero pad: sums stay exact
            x2f = jnp.pad(x2f, pad)

        kernel = functools.partial(_fused_kernel,
                                   pool_is_identity=pool_is_identity,
                                   hw_valid=HW, inv_hw=1.0 / HW)
        # (Could try pipeline_mode=pl.Buffered(3) here if xprof shows exposed DMA.)
        img_spec = pl.BlockSpec((bt, C, HWp), lambda b: (b, 0, 0))

        of, o2f = pl.pallas_call(
            kernel,
            out_shape=(jax.ShapeDtypeStruct((B_pad, C, HWp), x.dtype),
                       jax.ShapeDtypeStruct((B_pad, C, HWp), x2.dtype)),
            grid_spec=pltpu.PrefetchScalarGridSpec(
                num_scalar_prefetch=0,
                grid=(steps,),
                in_specs=[img_spec, img_spec,
                          pl.BlockSpec((C, Cr), lambda b: (0, 0)),
                          pl.BlockSpec((Cr, C), lambda b: (0, 0))],
                out_specs=[img_spec, img_spec]),
            input_output_aliases={0: 0, 1: 1},   # outputs reuse x / x2 HBM buffers
            compiler_params=pltpu.CompilerParams(
                dimension_semantics=("parallel",),
                vmem_limit_bytes=vmem_limit),
        )(xf, x2f, w1f, w2f)

        return (of[:B, :, :HW].reshape(B, C, H, W),
                o2f[:B, :, :HW].reshape(B, C, H, W))

    # --------------------- streaming (HW-tiled) fallback ----------------------
    # Channel reductions + SE MLP are tiny; do them in plain JAX (one extra read
    # of x / x2 from HBM), then stream the heavy elementwise pass tile by tile.
    y1 = jnp.mean(x.astype(jnp.float32), axis=(2, 3))                 # (B, C)
    y2 = jnp.mean(x2.astype(jnp.float32), axis=(2, 3))
    s1f = jax.nn.sigmoid(jnp.maximum(y1 @ w1f, 0.0) @ w2f)            # (B, C) f32
    s2f = jax.nn.sigmoid(jnp.maximum(y2 @ w1f, 0.0) @ w2f)
    if pool_is_identity:
        g1f = jnp.zeros_like(s1f)                                     # unused
        g2f = jnp.zeros_like(s2f)
    else:
        # sigmoid(max(x * s)) == sigmoid(s * max(x)) since s = sigmoid(.) > 0.
        g1f = jax.nn.sigmoid(s1f * jnp.max(x, axis=(2, 3)).astype(jnp.float32))
        g2f = jax.nn.sigmoid(s2f * jnp.max(x2, axis=(2, 3)).astype(jnp.float32))

    s1 = s1f.astype(x.dtype).reshape(B, C, 1)
    s2 = s2f.astype(x.dtype).reshape(B, C, 1)
    g1 = g1f.astype(x.dtype).reshape(B, C, 1)
    g2 = g2f.astype(x.dtype).reshape(B, C, 1)

    stream_mult = 16
    thw = (live_budget // (stream_mult * C * itemsize)) // 128 * 128
    thw = int(max(128, min(thw, _round_up(HW, 128), 64 * 1024)))
    HWpp = _round_up(HW, thw)
    n_hw = HWpp // thw

    xf = x.reshape(B, C, HW)
    x2f = x2.reshape(B, C, HW)
    if HWpp != HW:
        xf = jnp.pad(xf, ((0, 0), (0, 0), (0, HWpp - HW)))
        x2f = jnp.pad(x2f, ((0, 0), (0, 0), (0, HWpp - HW)))

    kernel = functools.partial(_streaming_kernel,
                               pool_is_identity=pool_is_identity)
    img_spec = pl.BlockSpec((1, C, thw), lambda b, h: (b, 0, h))
    vec_spec = pl.BlockSpec((1, C, 1), lambda b, h: (b, 0, 0))

    of, o2f = pl.pallas_call(
        kernel,
        out_shape=(jax.ShapeDtypeStruct((B, C, HWpp), x.dtype),
                   jax.ShapeDtypeStruct((B, C, HWpp), x2.dtype)),
        grid_spec=pltpu.PrefetchScalarGridSpec(
            num_scalar_prefetch=0,
            grid=(B, n_hw),
            in_specs=[img_spec, img_spec, vec_spec, vec_spec, vec_spec, vec_spec],
            out_specs=[img_spec, img_spec]),
        input_output_aliases={0: 0, 1: 1},
        compiler_params=pltpu.CompilerParams(
            dimension_semantics=("parallel", "parallel"),
            vmem_limit_bytes=vmem_limit),
    )(xf, x2f, s1, s2, g1, g2)

    return (of[:, :, :HW].reshape(B, C, H, W),
            o2f[:, :, :HW].reshape(B, C, H, W))


# ---------------------------------------------------------------------------
# Pure-JAX reference (mirrors the PyTorch forward) for verification
# ---------------------------------------------------------------------------
def mutual_attention_ref(x, x2, w1, w2, *, c1, c2):
    B, C, H, W = x.shape

    def se(v):
        y = jnp.mean(v, axis=(2, 3))                    # (B, C)
        h = jnp.maximum(y @ w1, 0.0)
        s = jax.nn.sigmoid(h @ w2)                      # (B, C)
        return v * s[:, :, None, None]

    def gap(v):                                         # AdaptiveMaxPool2d((c1, c2))
        if (c1, c2) == (H, W):
            return v
        return jnp.max(v.reshape(B, C, c1, H // c1, c2, W // c2), axis=(3, 5))

    x_se, x2_se = se(x), se(x2)
    x_w = jax.nn.sigmoid(gap(x_se))                     # (B, C, c1, c2)
    x2_w = jax.nn.sigmoid(gap(x2_se))
    return x + x_se * x2_w, x2 + x2_se * x_w


# ---------------------------------------------------------------------------
if __name__ == "__main__":
    def make_inputs(B, C, H, W, seed=0):
        Cr = C // 8
        key = jax.random.PRNGKey(seed)
        kx, kx2, kw1, kw2 = jax.random.split(key, 4)
        x = jax.random.normal(kx, (B, C, H, W), dtype=jnp.float32)
        x2 = jax.random.normal(kx2, (B, C, H, W), dtype=jnp.float32)
        b1 = 1.0 / (C ** 0.5)
        b2 = 1.0 / (Cr ** 0.5)
        w1 = jax.random.uniform(kw1, (C, Cr), minval=-b1, maxval=b1,
                                dtype=jnp.float32)
        w2 = jax.random.uniform(kw2, (Cr, C), minval=-b2, maxval=b2,
                                dtype=jnp.float32)
        return x, x2, w1, w2

    # Config A: MutualAttention(c1=1, c2=1, c3=32) -> SE(channel=32, reduction=8)
    x, x2, w1, w2 = make_inputs(2, 32, 16, 16, seed=0)
    H, W = 16, 16
    for (c1, c2) in ((1, 1), (H, W)):
        ref1, ref2 = mutual_attention_ref(x, x2, w1, w2, c1=c1, c2=c2)
        for streaming in (False, True):
            o1, o2 = mutual_attention(x, x2, w1, w2, c1=c1, c2=c2,
                                      force_streaming=streaming)
            jax.block_until_ready((o1, o2))
            assert jnp.allclose(o1, ref1, atol=1e-5, rtol=1e-5), (c1, c2, streaming)
            assert jnp.allclose(o2, ref2, atol=1e-5, rtol=1e-5), (c1, c2, streaming)

    # Config B: odd batch + non-128-multiple HW (exercises batch/HW padding path).
    xb, x2b, w1b, w2b = make_inputs(3, 32, 14, 14, seed=1)
    ref1, ref2 = mutual_attention_ref(xb, x2b, w1b, w2b, c1=1, c2=1)
    for streaming in (False, True):
        o1, o2 = mutual_attention(xb, x2b, w1b, w2b, c1=1, c2=1,
                                  force_streaming=streaming)
        jax.block_until_ready((o1, o2))
        assert jnp.allclose(o1, ref1, atol=1e-5, rtol=1e-5), ("B", streaming)
        assert jnp.allclose(o2, ref2, atol=1e-5, rtol=1e-5), ("B", streaming)

    print("KERNEL_OK")
</pallas_src>

<mosaic_0001>
module attributes {stable_mosaic.version = 11 : i64} {
  func.func @_fused_kernel(%arg0: i32, %arg1: memref<1x32x256xf32, #tpu.memory_space<vmem>>, %arg2: memref<1x32x256xf32, #tpu.memory_space<vmem>>, %arg3: memref<32x4xf32, #tpu.memory_space<vmem>>, %arg4: memref<4x32xf32, #tpu.memory_space<vmem>>, %arg5: memref<1x32x256xf32, #tpu.memory_space<vmem>>, %arg6: memref<1x32x256xf32, #tpu.memory_space<vmem>>) attributes {dimension_semantics = [#tpu.dimension_semantics<parallel>], iteration_bounds = array<i64: 2>, scalar_prefetch = 0 : i64, scratch_operands = 0 : i64, tpu.core_type = #tpu.core_type<tc>, window_params = [{transform_indices = @transform_0, window_bounds = array<i64: 1, 32, 256>}, {transform_indices = @transform_1, window_bounds = array<i64: 1, 32, 256>}, {pipeline_mode = #tpu.pipeline_mode<synchronous>, transform_indices = @transform_2, window_bounds = array<i64: 32, 4>}, {pipeline_mode = #tpu.pipeline_mode<synchronous>, transform_indices = @transform_3, window_bounds = array<i64: 4, 32>}, {transform_indices = @transform_4, window_bounds = array<i64: 1, 32, 256>}, {transform_indices = @transform_5, window_bounds = array<i64: 1, 32, 256>}]} {
    %c0 = arith.constant 0 : index
    %c0_0 = arith.constant 0 : index
    %c0_1 = arith.constant 0 : index
    %0 = vector.load %arg1[%c0, %c0_0, %c0_1] : memref<1x32x256xf32, #tpu.memory_space<vmem>>, vector<1x32x256xf32>
    %c0_2 = arith.constant 0 : index
    %c0_3 = arith.constant 0 : index
    %c0_4 = arith.constant 0 : index
    %1 = vector.load %arg2[%c0_2, %c0_3, %c0_4] : memref<1x32x256xf32, #tpu.memory_space<vmem>>, vector<1x32x256xf32>
    %c0_5 = arith.constant 0 : index
    %c0_6 = arith.constant 0 : index
    %2 = vector.load %arg3[%c0_5, %c0_6] : memref<32x4xf32, #tpu.memory_space<vmem>>, vector<32x4xf32>
    %c0_7 = arith.constant 0 : index
    %c0_8 = arith.constant 0 : index
    %3 = vector.load %arg4[%c0_7, %c0_8] : memref<4x32xf32, #tpu.memory_space<vmem>>, vector<4x32xf32>
    %cst = arith.constant dense<0.000000e+00> : vector<1x32xf32>
    %4 = vector.multi_reduction <add>, %0, %cst [2] : vector<1x32x256xf32> to vector<1x32xf32>
    %cst_9 = arith.constant dense<0.000000e+00> : vector<1x32xf32>
    %5 = vector.multi_reduction <add>, %1, %cst_9 [2] : vector<1x32x256xf32> to vector<1x32xf32>
    %6 = tpu.concatenate %4, %5 in 0 : vector<1x32xf32>, vector<1x32xf32> -> vector<2x32xf32>
    %cst_10 = arith.constant 3.906250e-03 : f32
    %7 = vector.broadcast %cst_10 : f32 to vector<2x32xf32>
    %8 = arith.mulf %6, %7 : vector<2x32xf32>
    %cst_11 = arith.constant dense<0.000000e+00> : vector<2x4xf32>
    %9 = tpu.matmul %8, %2, %cst_11 {dimension_numbers = #tpu.dot_dimension_numbers<[1], [0], [0], [1], [0, 0, 1, 1], [], []>} : vector<2x32xf32>, vector<32x4xf32>, vector<2x4xf32> -> vector<2x4xf32>
    %cst_12 = arith.constant 0.000000e+00 : f32
    %10 = vector.broadcast %cst_12 : f32 to vector<2x4xf32>
    %11 = arith.maximumf %9, %10 : vector<2x4xf32>
    %cst_13 = arith.constant dense<0.000000e+00> : vector<2x32xf32>
    %12 = tpu.matmul %11, %3, %cst_13 {dimension_numbers = #tpu.dot_dimension_numbers<[1], [0], [0], [1], [0, 0, 1, 1], [], []>} : vector<2x4xf32>, vector<4x32xf32>, vector<2x32xf32> -> vector<2x32xf32>
    %13 = arith.negf %12 : vector<2x32xf32>
    %14 = math.exp %13 : vector<2x32xf32>
    %cst_14 = arith.constant 1.000000e+00 : f32
    %15 = vector.broadcast %cst_14 : f32 to vector<2x32xf32>
    %16 = arith.addf %15, %14 : vector<2x32xf32>
    %17 = arith.divf %15, %16 : vector<2x32xf32>
    %18 = vector.extract_strided_slice %17 {offsets = [0, 0], sizes = [1, 32], strides = [1, 1]} : vector<2x32xf32> to vector<1x32xf32>
    %19 = vector.shape_cast %18 : vector<1x32xf32> to vector<1x32x1xf32>
    %20 = vector.broadcast %19 : vector<1x32x1xf32> to vector<1x32x256xf32>
    %21 = arith.mulf %0, %20 : vector<1x32x256xf32>
    %22 = vector.extract_strided_slice %17 {offsets = [1, 0], sizes = [1, 32], strides = [1, 1]} : vector<2x32xf32> to vector<1x32xf32>
    %23 = vector.shape_cast %22 : vector<1x32xf32> to vector<1x32x1xf32>
    %24 = vector.broadcast %23 : vector<1x32x1xf32> to vector<1x32x256xf32>
    %25 = arith.mulf %1, %24 : vector<1x32x256xf32>
    %cst_15 = arith.constant dense<0xFF800000> : vector<1x32xf32>
    %26 = vector.multi_reduction <maximumf>, %21, %cst_15 [2] : vector<1x32x256xf32> to vector<1x32xf32>
    %27 = vector.shape_cast %26 : vector<1x32xf32> to vector<1x32x1xf32>
    %28 = arith.negf %27 : vector<1x32x1xf32>
    %29 = math.exp %28 : vector<1x32x1xf32>
    %cst_16 = arith.constant 1.000000e+00 : f32
    %30 = vector.broadcast %cst_16 : f32 to vector<1x32x1xf32>
    %31 = arith.addf %30, %29 : vector<1x32x1xf32>
    %32 = arith.divf %30, %31 : vector<1x32x1xf32>
    %cst_17 = arith.constant dense<0xFF800000> : vector<1x32xf32>
    %33 = vector.multi_reduction <maximumf>, %25, %cst_17 [2] : vector<1x32x256xf32> to vector<1x32xf32>
    %34 = vector.shape_cast %33 : vector<1x32xf32> to vector<1x32x1xf32>
    %35 = arith.negf %34 : vector<1x32x1xf32>
    %36 = math.exp %35 : vector<1x32x1xf32>
    %cst_18 = arith.constant 1.000000e+00 : f32
    %37 = vector.broadcast %cst_18 : f32 to vector<1x32x1xf32>
    %38 = arith.addf %37, %36 : vector<1x32x1xf32>
    %39 = arith.divf %37, %38 : vector<1x32x1xf32>
    %40 = vector.broadcast %39 : vector<1x32x1xf32> to vector<1x32x256xf32>
    %41 = arith.mulf %21, %40 : vector<1x32x256xf32>
    %42 = arith.addf %0, %41 : vector<1x32x256xf32>
    %c0_19 = arith.constant 0 : index
    %c0_20 = arith.constant 0 : index
    %c0_21 = arith.constant 0 : index
    %43 = vector.load %arg5[%c0_19, %c0_20, %c0_21] : memref<1x32x256xf32, #tpu.memory_space<vmem>>, vector<1x32x256xf32>
    tpu.vector_store %arg5[%c0_19, %c0_20, %c0_21], %42 {strides = array<i32>} : memref<1x32x256xf32, #tpu.memory_space<vmem>>, vector<1x32x256xf32>,
    %44 = vector.broadcast %32 : vector<1x32x1xf32> to vector<1x32x256xf32>
    %45 = arith.mulf %25, %44 : vector<1x32x256xf32>
    %46 = arith.addf %1, %45 : vector<1x32x256xf32>
    %c0_22 = arith.constant 0 : index
    %c0_23 = arith.constant 0 : index
    %c0_24 = arith.constant 0 : index
    %47 = vector.load %arg6[%c0_22, %c0_23, %c0_24] : memref<1x32x256xf32, #tpu.memory_space<vmem>>, vector<1x32x256xf32>
    tpu.vector_store %arg6[%c0_22, %c0_23, %c0_24], %46 {strides = array<i32>} : memref<1x32x256xf32, #tpu.memory_space<vmem>>, vector<1x32x256xf32>,
    return
  }
  func.func @transform_0(%arg0: i32) -> (i32, i32, i32) {
    %c0_i32 = arith.constant 0 : i32
    %c0_i32_0 = arith.constant 0 : i32
    %c0_i32_1 = arith.constant 0 : i32
    return %arg0, %c0_i32, %c0_i32_0 : i32, i32, i32
  }
  func.func @transform_1(%arg0: i32) -> (i32, i32, i32) {
    %c0_i32 = arith.constant 0 : i32
    %c0_i32_0 = arith.constant 0 : i32
    %c0_i32_1 = arith.constant 0 : i32
    return %arg0, %c0_i32, %c0_i32_0 : i32, i32, i32
  }
  func.func @transform_2(%arg0: i32) -> (i32, i32) {
    %c0_i32 = arith.constant 0 : i32
    %c0_i32_0 = arith.constant 0 : i32
    %c0_i32_1 = arith.constant 0 : i32
    return %c0_i32, %c0_i32_0 : i32, i32
  }
  func.func @transform_3(%arg0: i32) -> (i32, i32) {
    %c0_i32 = arith.constant 0 : i32
    %c0_i32_0 = arith.constant 0 : i32
    %c0_i32_1 = arith.constant 0 : i32
    return %c0_i32, %c0_i32_0 : i32, i32
  }
  func.func @transform_4(%arg0: i32) -> (i32, i32, i32) {
    %c0_i32 = arith.constant 0 : i32
    %c0_i32_0 = arith.constant 0 : i32
    %c0_i32_1 = arith.constant 0 : i32
    return %arg0, %c0_i32, %c0_i32_0 : i32, i32, i32
  }
  func.func @transform_5(%arg0: i32) -> (i32, i32, i32) {
    %c0_i32 = arith.constant 0 : i32
    %c0_i32_0 = arith.constant 0 : i32
    %c0_i32_1 = arith.constant 0 : i32
    return %arg0, %c0_i32, %c0_i32_0 : i32, i32, i32
  }
}

</mosaic_0001>

<llo_original>
// kernel: mutual_attention.1
$region0: #{mutual_attention.1}
  #allocation0 [shape = 'u32[]', space=smem, size = 0x4, offset = 0x4, fixed_abs, tag = 'smem constant byte address 0x4 - core index']
  #allocation1 [shape = 'u32[144,128]{1,0:T(1,128)}', space=vmem, size = 0x12000, scoped, tag = 'internal scratch']
  %s0 = inlined_call_operand.vmem [shape: f32[2,32,256], index: 0, kind: input, shape index: {}, may-alias: {0,4}]
  %s1 = inlined_call_operand.vmem [shape: f32[2,32,256], index: 1, kind: input, shape index: {}, may-alias: {1,5}]
  %s2 = inlined_call_operand.vmem [shape: f32[32,4], index: 2, kind: input, shape index: {}]
  %s3 = inlined_call_operand.vmem [shape: f32[4,32], index: 3, kind: input, shape index: {}]
  %s4 = inlined_call_operand.vmem [shape: f32[2,32,256], index: 4, kind: output, shape index: {0}, may-alias: {0,4}]
  %s5 = inlined_call_operand.vmem [shape: f32[2,32,256], index: 5, kind: output, shape index: {1}, may-alias: {1,5}]
  %6 = xla_tuple %s4, %s5
  %s7 = sld [smem:[#allocation0]]
  $region57: #{mutual_attention.1} parent=0
    _
  %s9 = ssub.s32 1, %s7
  %s10 = scalar_select 0, %s9, %s7
  loop: start=0, step=1, limit=4
  $region2: #{mutual_attention.1} parent=0 // loop_pre_header
    _
  $region3: #{mutual_attention.1} parent=0 // loop_header
    %s12 = sphi 0, %s16
    %p13 = scmp.ge.s32.totalorder %s12, 4
    %s22 = sphi 0, %s24
    %s25 = sphi 0, %s22
    %s26 = sphi 0, %s25
    %s42 = sphi 0, %s26
    %s48 = sphi 0, %s50
    %s51 = sphi 0, %s48
    %s52 = sphi 0, %s51
    %s68 = sphi 0, %s52
    %s72 = sphi 0, %s72
    %s74 = sphi 0, %s72
    %s75 = sphi 0, %s74
    %s89 = sphi 0, %s75
    %s93 = sphi 0, %s93
    %s95 = sphi 0, %s93
    %s96 = sphi 0, %s95
    %s110 = sphi 0, %s96
    %s116 = sphi 0, %s118
    %s119 = sphi 0, %s116
    %s120 = sphi 0, %s119
    %s136 = sphi 0, %s120
    %s142 = sphi 0, %s144
    %s145 = sphi 0, %s142
    %s146 = sphi 0, %s145
    %s162 = sphi 0, %s146
  $region4: #{mutual_attention.1} parent=0 // loop_header_branch
    %15 = sbr.rel (%p13) target = $region8
  $region5: #{mutual_attention.1} parent=0 // loop_body
    %s17 = ssub.s32 %s12, 1
    %s18 = ssub.s32 %s12, 2
    %s19 = sadd.s32 %s12, 1
    %s20 = ssub.s32 %s12, %s19
    %p21 = scmp.eq.s32.totalorder %s20, 0
    %s23 = sadd.s32 %s22, 1
    %s24 = scalar_select %p21, %s22, %s23
    %p27 = pneg %p21
    %p28 = scmp.eq.s32.totalorder %s12, 1
    %p29 = por %p27, %p28
    %p30 = scmp.ne.s32.totalorder %s22, %s25
    %p31 = scmp.eq.s32.totalorder %s12, 0
    %p32 = por %p30, %p31
    %p33 = scmp.ne.s32.totalorder %s22, %s25
    %p34 = scmp.eq.s32.totalorder %s17, 1
    %p35 = por %p33, %p34
    %p36 = scmp.ne.s32.totalorder %s25, %s26
    %p37 = scmp.eq.s32.totalorder %s17, 0
    %p38 = por %p36, %p37
    %p39 = scmp.ne.s32.totalorder %s25, %s26
    %p40 = scmp.eq.s32.totalorder %s18, 1
    %p41 = por %p39, %p40
    %p43 = scmp.ne.s32.totalorder %s26, %s42
    %p44 = scmp.eq.s32.totalorder %s18, 0
    %p45 = por %p43, %p44
    %s46 = ssub.s32 %s12, %s19
    %p47 = scmp.eq.s32.totalorder %s46, 0
    %s49 = sadd.s32 %s48, 1
    %s50 = scalar_select %p47, %s48, %s49
    %p53 = pneg %p47
    %p54 = scmp.eq.s32.totalorder %s12, 1
    %p55 = por %p53, %p54
    %p56 = scmp.ne.s32.totalorder %s48, %s51
    %p57 = scmp.eq.s32.totalorder %s12, 0
    %p58 = por %p56, %p57
    %p59 = scmp.ne.s32.totalorder %s48, %s51
    %p60 = scmp.eq.s32.totalorder %s17, 1
    %p61 = por %p59, %p60
    %p62 = scmp.ne.s32.totalorder %s51, %s52
    %p63 = scmp.eq.s32.totalorder %s17, 0
    %p64 = por %p62, %p63
    %p65 = scmp.ne.s32.totalorder %s51, %s52
    %p66 = scmp.eq.s32.totalorder %s18, 1
    %p67 = por %p65, %p66
    %p69 = scmp.ne.s32.totalorder %s52, %s68
    %p70 = scmp.eq.s32.totalorder %s18, 0
    %p71 = por %p69, %p70
    %s73 = sadd.s32 %s72, 1
    %p76 = scmp.eq.s32.totalorder %s12, 1
    %p77 = scmp.ne.s32.totalorder %s72, %s74
    %p78 = scmp.eq.s32.totalorder %s12, 0
    %p79 = por %p77, %p78
    %p80 = scmp.ne.s32.totalorder %s72, %s74
    %p81 = scmp.eq.s32.totalorder %s17, 1
    %p82 = por %p80, %p81
    %p83 = scmp.ne.s32.totalorder %s74, %s75
    %p84 = scmp.eq.s32.totalorder %s17, 0
    %p85 = por %p83, %p84
    %p86 = scmp.ne.s32.totalorder %s74, %s75
    %p87 = scmp.eq.s32.totalorder %s18, 1
    %p88 = por %p86, %p87
    %p90 = scmp.ne.s32.totalorder %s75, %s89
    %p91 = scmp.eq.s32.totalorder %s18, 0
    %p92 = por %p90, %p91
    %s94 = sadd.s32 %s93, 1
    %p97 = scmp.eq.s32.totalorder %s12, 1
    %p98 = scmp.ne.s32.totalorder %s93, %s95
    %p99 = scmp.eq.s32.totalorder %s12, 0
    %p100 = por %p98, %p99
    %p101 = scmp.ne.s32.totalorder %s93, %s95
    %p102 = scmp.eq.s32.totalorder %s17, 1
    %p103 = por %p101, %p102
    %p104 = scmp.ne.s32.totalorder %s95, %s96
    %p105 = scmp.eq.s32.totalorder %s17, 0
    %p106 = por %p104, %p105
    %p107 = scmp.ne.s32.totalorder %s95, %s96
    %p108 = scmp.eq.s32.totalorder %s18, 1
    %p109 = por %p107, %p108
    %p111 = scmp.ne.s32.totalorder %s96, %s110
    %p112 = scmp.eq.s32.totalorder %s18, 0
    %p113 = por %p111, %p112
    %s114 = ssub.s32 %s12, %s19
    %p115 = scmp.eq.s32.totalorder %s114, 0
    %s117 = sadd.s32 %s116, 1
    %s118 = scalar_select %p115, %s116, %s117
    %p121 = pneg %p115
    %p122 = scmp.eq.s32.totalorder %s12, 1
    %p123 = por %p121, %p122
    %p124 = scmp.ne.s32.totalorder %s116, %s119
    %p125 = scmp.eq.s32.totalorder %s12, 0
    %p126 = por %p124, %p125
    %p127 = scmp.ne.s32.totalorder %s116, %s119
    %p128 = scmp.eq.s32.totalorder %s17, 1
    %p129 = por %p127, %p128
    %p130 = scmp.ne.s32.totalorder %s119, %s120
    %p131 = scmp.eq.s32.totalorder %s17, 0
    %p132 = por %p130, %p131
    %p133 = scmp.ne.s32.totalorder %s119, %s120
    %p134 = scmp.eq.s32.totalorder %s18, 1
    %p135 = por %p133, %p134
    %p137 = scmp.ne.s32.totalorder %s120, %s136
    %p138 = scmp.eq.s32.totalorder %s18, 0
    %p139 = por %p137, %p138
    %s140 = ssub.s32 %s12, %s19
    %p141 = scmp.eq.s32.totalorder %s140, 0
    %s143 = sadd.s32 %s142, 1
    %s144 = scalar_select %p141, %s142, %s143
    %p147 = pneg %p141
    %p148 = scmp.eq.s32.totalorder %s12, 1
    %p149 = por %p147, %p148
    %p150 = scmp.ne.s32.totalorder %s142, %s145
    %p151 = scmp.eq.s32.totalorder %s12, 0
    %p152 = por %p150, %p151
    %p153 = scmp.ne.s32.totalorder %s142, %s145
    %p154 = scmp.eq.s32.totalorder %s17, 1
    %p155 = por %p153, %p154
    %p156 = scmp.ne.s32.totalorder %s145, %s146
    %p157 = scmp.eq.s32.totalorder %s17, 0
    %p158 = por %p156, %p157
    %p159 = scmp.ne.s32.totalorder %s145, %s146
    %p160 = scmp.eq.s32.totalorder %s18, 1
    %p161 = por %p159, %p160
    %p163 = scmp.ne.s32.totalorder %s146, %s162
    %p164 = scmp.eq.s32.totalorder %s18, 0
    %p165 = por %p163, %p164
    %p166 = scmp.le.s32.totalorder 1, %s12
    %p167 = scmp.lt.s32.totalorder %s12, 3
    %p168 = pnand %p166, %p167
    %p169 = pneg %p168
    // Predicated region
    $region9: #{mutual_attention.1} parent=5 // pred_check
      _
    $region10: #{mutual_attention.1} parent=5 // pred_check_branch
      %171 = sbr.rel (%p168) target = $region12
    $region11: #{mutual_attention.1} parent=5 // pred_region
      %s172 = ssub.s32 %s12, 1
      // Predicated region
      $region13: #{mutual_attention.1} parent=11 // pred_check
        %p173 = pneg %p85
      $region14: #{mutual_attention.1} parent=11 // pred_check_branch
        %175 = sbr.rel (%p173) target = $region16
      $region15: #{mutual_attention.1} parent=11 // pred_region
        _
      $region16: #{mutual_attention.1} parent=11 // pred_fallthru
        _
      // Predicated region
      $region17: #{mutual_attention.1} parent=11 // pred_check
        %p176 = pneg %p106
      $region18: #{mutual_attention.1} parent=11 // pred_check_branch
        %178 = sbr.rel (%p176) target = $region20
      $region19: #{mutual_attention.1} parent=11 // pred_region
        _
      $region20: #{mutual_attention.1} parent=11 // pred_fallthru
        _
    $region12: #{mutual_attention.1} parent=5 // pred_fallthru
      _
    %p179 = scmp.lt.s32.totalorder %s12, 2
    // Predicated region
    $region21: #{mutual_attention.1} parent=5 // pred_check
      %p180 = pneg %p179
    $region22: #{mutual_attention.1} parent=5 // pred_check_branch
      %182 = sbr.rel (%p180) target = $region24
    $region23: #{mutual_attention.1} parent=5 // pred_region
      // Predicated region
      $region25: #{mutual_attention.1} parent=23 // pred_check
        %p183 = pneg %p32
      $region26: #{mutual_attention.1} parent=23 // pred_check_branch
        %185 = sbr.rel (%p183) target = $region28
      $region27: #{mutual_attention.1} parent=23 // pred_region
        %p186 = scmp.lt.s32.totalorder %s12, 1
        %s187 = scalar_select %p186, %s12, 1
        %s188 = smul.addr %s187, 8
        %s189 = smul.addr %s188, 8
        %s190 = scalar_lea.vmem %s0, %s189
      $region28: #{mutual_attention.1} parent=23 // pred_fallthru
        _
      // Predicated region
      $region29: #{mutual_attention.1} parent=23 // pred_check
        %p191 = pneg %p58
      $region30: #{mutual_attention.1} parent=23 // pred_check_branch
        %193 = sbr.rel (%p191) target = $region32
      $region31: #{mutual_attention.1} parent=23 // pred_region
        %p194 = scmp.lt.s32.totalorder %s12, 1
        %s195 = scalar_select %p194, %s12, 1
        %s196 = smul.addr %s195, 8
        %s197 = smul.addr %s196, 8
        %s198 = scalar_lea.vmem %s1, %s197
      $region32: #{mutual_attention.1} parent=23 // pred_fallthru
        _
    $region24: #{mutual_attention.1} parent=5 // pred_fallthru
      _
    %p199 = scmp.le.s32.totalorder 1, %s12
    %p200 = scmp.lt.s32.totalorder %s12, 3
    %p201 = pnand %p199, %p200
    %p202 = pneg %p201
    // Predicated region
    $region33: #{mutual_attention.1} parent=5 // pred_check
      _
    $region34: #{mutual_attention.1} parent=5 // pred_check_branch
      %204 = sbr.rel (%p201) target = $region36
    $region35: #{mutual_attention.1} parent=5 // pred_region
      %s205 = ssub.s32 %s12, 1
      %p206 = scmp.lt.s32.totalorder %s17, 1
      %s207 = scalar_select %p206, %s17, 1
      %s208 = smul.addr %s207, 8
      %s209 = smul.addr %s208, 8
      %s210 = scalar_lea.vmem %s0, %s209
      %p211 = pneg %p38
      %p212 = pneg %p35
      %p213 = scmp.lt.s32.totalorder %s17, 1
      %s214 = scalar_select %p213, %s17, 1
      %s215 = smul.addr %s214, 8
      %s216 = smul.addr %s215, 8
      %s217 = scalar_lea.vmem %s1, %s216
      %p218 = pneg %p64
      %p219 = pneg %p61
      %p220 = pneg %p85
      %p221 = pneg %p82
      %p222 = pneg %p106
      %p223 = pneg %p103
      %p224 = pneg %p132
      %p225 = pneg %p129
      %p226 = scmp.lt.s32.totalorder %s17, 1
      %s227 = scalar_select %p226, %s17, 1
      %s228 = smul.addr %s227, 8
      %s229 = smul.addr %s228, 8
      %s230 = scalar_lea.vmem %s4, %s229
      %p231 = pneg %p158
      %p232 = pneg %p155
      %p233 = scmp.lt.s32.totalorder %s17, 1
      %s234 = scalar_select %p233, %s17, 1
      %s235 = smul.addr %s234, 8
      %s236 = smul.addr %s235, 8
      %s237 = scalar_lea.vmem %s5, %s236
      %p238 = scmp.lt.s32.totalorder %s17, 1
      %s239 = scalar_select %p238, %s17, 1
      %s240 = smul.addr %s239, 8
      %s241 = smul.addr %s240, 8
      %s242 = scalar_lea.vmem %s0, %s241
      %p243 = scmp.lt.s32.totalorder %s17, 1
      %s244 = scalar_select %p243, %s17, 1
      %s245 = smul.addr %s244, 8
      %s246 = smul.addr %s245, 8
      %s247 = scalar_lea.vmem %s1, %s246
      %p248 = scmp.lt.s32.totalorder %s17, 1
      %s249 = scalar_select %p248, %s17, 1
      %s250 = smul.addr %s249, 8
      %s251 = smul.addr %s250, 8
      %s252 = scalar_lea.vmem %s4, %s251
      %p253 = scmp.lt.s32.totalorder %s17, 1
      %s254 = scalar_select %p253, %s17, 1
      %s255 = smul.addr %s254, 8
      %s256 = smul.addr %s255, 8
      %s257 = scalar_lea.vmem %s5, %s256
      %v258 = vld [vmem:[%s242] sm:$0xff]
      %v259 = vld [vmem:[%s242 + $0x8] sm:$0xff]
      %v260 = vld [vmem:[%s242 + $0x10] sm:$0xff]
      %v261 = vld [vmem:[%s242 + $0x18] sm:$0xff]
      %v262 = vld [vmem:[%s242 + $0x20] sm:$0xff]
      %v263 = vld [vmem:[%s242 + $0x28] sm:$0xff]
      %v264 = vld [vmem:[%s242 + $0x30] sm:$0xff]
      %v265 = vld [vmem:[%s242 + $0x38] sm:$0xff]
      %v266 = vld [vmem:[%s247] sm:$0xff]
      %v267 = vld [vmem:[%s247 + $0x8] sm:$0xff]
      %v268 = vld [vmem:[%s247 + $0x10] sm:$0xff]
      %v269 = vld [vmem:[%s247 + $0x18] sm:$0xff]
      %v270 = vld [vmem:[%s247 + $0x20] sm:$0xff]
      %v271 = vld [vmem:[%s247 + $0x28] sm:$0xff]
      %v272 = vld [vmem:[%s247 + $0x30] sm:$0xff]
      %v273 = vld [vmem:[%s247 + $0x38] sm:$0xff]
      %v274 = vld [vmem:[%s2] sm:$0xff]
      %v275 = vld [vmem:[%s2 + $0x8] sm:$0xff]
      %v276 = vld [vmem:[%s2 + $0x10] sm:$0xff]
      %v277 = vld [vmem:[%s2 + $0x18] sm:$0xff]
      %v278 = vld [vmem:[%s3] sm:$0xf]
      %v279 = vadd.f32 %v258, %v259
      %280 = vadd.xlane.f32.xlu0 %v279
      %v281 = vpop.xlane.xlu0 %280
      %v282 = vadd.f32 %v260, %v261
      %283 = vadd.xlane.f32.xlu0 %v282
      %v284 = vpop.xlane.xlu0 %283
      %v285 = vadd.f32 %v262, %v263
      %286 = vadd.xlane.f32.xlu0 %v285
      %v287 = vpop.xlane.xlu0 %286
      %v288 = vadd.f32 %v264, %v265
      %289 = vadd.xlane.f32.xlu0 %v288
      %v290 = vpop.xlane.xlu0 %289
      %v291 = vadd.f32 %v266, %v267
      %292 = vadd.xlane.f32.xlu0 %v291
      %v293 = vpop.xlane.xlu0 %292
      %v294 = vadd.f32 %v268, %v269
      %295 = vadd.xlane.f32.xlu0 %v294
      %v296 = vpop.xlane.xlu0 %295
      %v297 = vadd.f32 %v270, %v271
      %298 = vadd.xlane.f32.xlu0 %v297
      %v299 = vpop.xlane.xlu0 %298
      %v300 = vadd.f32 %v272, %v273
      %301 = vadd.xlane.f32.xlu0 %v300
      %v302 = vpop.xlane.xlu0 %301
      %v307 = vlaneseq
      %v308 = vand.u32 %v307, 127
      %v309 = vlaneseq
      %v310 = vshrl.u32 %v309, 7
      %v311 = vsub.s32 %v308, %v310
      %v312 = vrot.slane %v281, %v311
      %v313 = vadd.s32 %v308, 4294967288
      %v314 = vlaneseq
      %v315 = vshrl.u32 %v314, 7
      %v316 = vsub.s32 %v313, %v315
      %v317 = vrot.slane %v284, %v316
      %vm318 = vcmask 130112
      %v319 = vsel %vm318, %v317, %v312
      %v320 = vadd.s32 %v308, 4294967280
      %v321 = vlaneseq
      %v322 = vshrl.u32 %v321, 7
      %v323 = vsub.s32 %v320, %v322
      %v324 = vrot.slane %v287, %v323
      %vm325 = vcmask 195712
      %v326 = vsel %vm325, %v324, %v319
      %v327 = vadd.s32 %v308, 4294967272
      %v328 = vlaneseq
      %v329 = vshrl.u32 %v328, 7
      %v330 = vsub.s32 %v327, %v329
      %v331 = vrot.slane %v290, %v330
      %vm332 = vcmask 261312
      %v333 = vsel %vm332, %v331, %v326
      %v339 = vlaneseq
      %v340 = vshrl.u32 %v339, 7
      %v341 = vsub.s32 %v308, %v340
      %v342 = vrot.slane %v293, %v341
      %v343 = vlaneseq
      %v344 = vshrl.u32 %v343, 7
      %v345 = vsub.s32 %v313, %v344
      %v346 = vrot.slane %v296, %v345
      %v347 = vsel %vm318, %v346, %v342
      %v348 = vlaneseq
      %v349 = vshrl.u32 %v348, 7
      %v350 = vsub.s32 %v320, %v349
      %v351 = vrot.slane %v299, %v350
      %v352 = vsel %vm325, %v351, %v347
      %v353 = vlaneseq
      %v354 = vshrl.u32 %v353, 7
      %v355 = vsub.s32 %v327, %v354
      %v356 = vrot.slane %v302, %v355
      %v357 = vsel %vm332, %v356, %v352
      %vm359 = vcmask 1040384
      %v360 = vsel %vm359, %v333, %v357
      %v361 = vmul.f32 %v360, 0.00390625
      %vm362 = vcmask 261120
      %v364 = vsel %vm362, %v361, 0
      %366 = vmatprep.subr.mxu0 0.0
      %367 = vmatpush1.msra.mxu0 %v274
      %368 = vmatprep.subr.mxu0 0.0
      %369 = vmatpush1.msra.mxu0 %v275
      %370 = vmatprep.subr.mxu0 0.0
      %371 = vmatpush1.msra.mxu0 %v276
      %372 = vmatprep.subr.mxu0 0.0
      %373 = vmatpush1.msra.mxu0 %v277
      %374 = vmatprep.subr.mxu0 0.0
      %375 = vmatpush1.msra.mxu0 0.0
      %376 = vmatprep.subr.mxu0 0.0
      %377 = vmatpush1.msra.mxu0 0.0
      %378 = vmatprep.subr.mxu0 0.0
      %379 = vmatpush1.msra.mxu0 0.0
      %380 = vmatprep.subr.mxu0 0.0
      %381 = vmatpush1.msra.mxu0 0.0
      %382 = vmatprep.subr.mxu0 0.0
      %383 = vmatpush1.msra.mxu0 0.0
      %384 = vmatprep.subr.mxu0 0.0
      %385 = vmatpush1.msra.mxu0 0.0
      %386 = vmatprep.subr.mxu0 0.0
      %387 = vmatpush1.msra.mxu0 0.0
      %388 = vmatprep.subr.mxu0 0.0
      %389 = vmatpush1.msra.mxu0 0.0
      %390 = vmatprep.subr.mxu0 0.0
      %391 = vmatpush1.msra.mxu0 0.0
      %392 = vmatprep.subr.mxu0 0.0
      %393 = vmatpush1.msra.mxu0 0.0
      %394 = vmatprep.subr.mxu0 0.0
      %395 = vmatpush1.msra.mxu0 0.0
      %396 = vmatprep.subr.mxu0 0.0
      %397 = vmatpush1.msra.mxu0 0.0
      %398 = vmatprep.subr.mxu0 0.0
      %399 = vmatpush1.msra.mxu0 0.0
      %400 = vmatprep.subr.mxu0 0.0
      %401 = vmatpush1.msra.mxu0 0.0
      %402 = vmatprep.subr.mxu0 0.0
      %403 = vmatpush1.msra.mxu0 0.0
      %404 = vmatprep.subr.mxu0 0.0
      %405 = vmatpush1.msra.mxu0 0.0
      %406 = vmatprep.subr.mxu0 0.0
      %407 = vmatpush1.msra.mxu0 0.0
      %408 = vmatprep.subr.mxu0 0.0
      %409 = vmatpush1.msra.mxu0 0.0
      %410 = vmatprep.subr.mxu0 0.0
      %411 = vmatpush1.msra.mxu0 0.0
      %412 = vmatprep.subr.mxu0 0.0
      %413 = vmatpush1.msra.mxu0 0.0
      %414 = vmatprep.subr.mxu0 0.0
      %415 = vmatpush1.msra.mxu0 0.0
      %416 = vmatprep.subr.mxu0 0.0
      %417 = vmatpush1.msra.mxu0 0.0
      %418 = vmatprep.subr.mxu0 0.0
      %419 = vmatpush1.msra.mxu0 0.0
      %420 = vmatprep.subr.mxu0 0.0
      %421 = vmatpush1.msra.mxu0 0.0
      %422 = vmatprep.subr.mxu0 0.0
      %423 = vmatpush1.msra.mxu0 0.0
      %424 = vmatprep.subr.mxu0 0.0
      %425 = vmatpush1.msra.mxu0 0.0
      %426 = vmatprep.subr.mxu0 0.0
      %427 = vmatpush1.msra.mxu0 0.0
      %428 = vmatprep.subr.mxu0 0.0
      %429 = vmatpush1.msra.mxu0 0.0
      %430 = vmatprep.mubr.f32.mxu0 0.0
      %431 = vmatmul.mubr.f32.gmra.mrb[0].mxu0 %v364
      %v432 = vpop.f32.mrb[0].mxu0
      %v433 = vadd.f32 0.0, %v432
      %v434 = vpop.f32.mrb[0].mxu0
      %435 = vdwg.mxu0
      %v436 = vmax.f32 %v433, 0.0
      %vm437 = vcmask 31744
      %v439 = vsel %vm437, %v436, 0
      %vm441 = vcmask 1043456
      %v443 = vsel %vm441, %v278, 0
      %445 = vmatprep.subr.mxu0 0.0
      %446 = vmatpush1.msra.mxu0 %v443
      %447 = vmatprep.subr.mxu0 0.0
      %448 = vmatpush1.msra.mxu0 0.0
      %449 = vmatprep.subr.mxu0 0.0
      %450 = vmatpush1.msra.mxu0 0.0
      %451 = vmatprep.subr.mxu0 0.0
      %452 = vmatpush1.msra.mxu0 0.0
      %453 = vmatprep.subr.mxu0 0.0
      %454 = vmatpush1.msra.mxu0 0.0
      %455 = vmatprep.subr.mxu0 0.0
      %456 = vmatpush1.msra.mxu0 0.0
      %457 = vmatprep.subr.mxu0 0.0
      %458 = vmatpush1.msra.mxu0 0.0
      %459 = vmatprep.subr.mxu0 0.0
      %460 = vmatpush1.msra.mxu0 0.0
      %461 = vmatprep.subr.mxu0 0.0
      %462 = vmatpush1.msra.mxu0 0.0
      %463 = vmatprep.subr.mxu0 0.0
      %464 = vmatpush1.msra.mxu0 0.0
      %465 = vmatprep.subr.mxu0 0.0
      %466 = vmatpush1.msra.mxu0 0.0
      %467 = vmatprep.subr.mxu0 0.0
      %468 = vmatpush1.msra.mxu0 0.0
      %469 = vmatprep.subr.mxu0 0.0
      %470 = vmatpush1.msra.mxu0 0.0
      %471 = vmatprep.subr.mxu0 0.0
      %472 = vmatpush1.msra.mxu0 0.0
      %473 = vmatprep.subr.mxu0 0.0
      %474 = vmatpush1.msra.mxu0 0.0
      %475 = vmatprep.subr.mxu0 0.0
      %476 = vmatpush1.msra.mxu0 0.0
      %477 = vmatprep.subr.mxu0 0.0
      %478 = vmatpush1.msra.mxu0 0.0
      %479 = vmatprep.subr.mxu0 0.0
      %480 = vmatpush1.msra.mxu0 0.0
      %481 = vmatprep.subr.mxu0 0.0
      %482 = vmatpush1.msra.mxu0 0.0
      %483 = vmatprep.subr.mxu0 0.0
      %484 = vmatpush1.msra.mxu0 0.0
      %485 = vmatprep.subr.mxu0 0.0
      %486 = vmatpush1.msra.mxu0 0.0
      %487 = vmatprep.subr.mxu0 0.0
      %488 = vmatpush1.msra.mxu0 0.0
      %489 = vmatprep.subr.mxu0 0.0
      %490 = vmatpush1.msra.mxu0 0.0
      %491 = vmatprep.subr.mxu0 0.0
      %492 = vmatpush1.msra.mxu0 0.0
      %493 = vmatprep.subr.mxu0 0.0
      %494 = vmatpush1.msra.mxu0 0.0
      %495 = vmatprep.subr.mxu0 0.0
      %496 = vmatpush1.msra.mxu0 0.0
      %497 = vmatprep.subr.mxu0 0.0
      %498 = vmatpush1.msra.mxu0 0.0
      %499 = vmatprep.subr.mxu0 0.0
      %500 = vmatpush1.msra.mxu0 0.0
      %501 = vmatprep.subr.mxu0 0.0
      %502 = vmatpush1.msra.mxu0 0.0
      %503 = vmatprep.subr.mxu0 0.0
      %504 = vmatpush1.msra.mxu0 0.0
      %505 = vmatprep.subr.mxu0 0.0
      %506 = vmatpush1.msra.mxu0 0.0
      %507 = vmatprep.subr.mxu0 0.0
      %508 = vmatpush1.msra.mxu0 0.0
      %509 = vmatprep.mubr.f32.mxu0 0.0
      %510 = vmatmul.mubr.f32.gmra.mrb[0].mxu0 %v439
      %v511 = vpop.f32.mrb[0].mxu0
      %v512 = vadd.f32 0.0, %v511
      %v513 = vpop.f32.mrb[0].mxu0
      %514 = vdwg.mxu0
      %v515 = vxor.u32 %v512, 2147483648
      %v516 = vmul.f32 %v515, 1.442695
      %v517 = vpow.pop %v516
      %v518 = vadd.f32 %v517, 1.0
      %v519 = vrcp.pop %v518
      %v520 = vmul.f32 1.0, %v519
      %v521 = vlaneseq
      %v522 = vshrl.u32 %v521, 7
      %v523 = vsub.s32 0, %v522
      %v524 = vrot.slane %v520, %v523
      %526 = vbcast.lane.b32.xlu0 %v524, 256
      %v527 = vpop.permute.xlu0 %526
      %s529 = sor.u32 256, 8
      %530 = vbcast.lane.b32.xlu0 %v524, %s529
      %v531 = vpop.permute.xlu0 %530
      %s533 = sor.u32 256, 16
      %534 = vbcast.lane.b32.xlu0 %v524, %s533
      %v535 = vpop.permute.xlu0 %534
      %s537 = sor.u32 256, 24
      %538 = vbcast.lane.b32.xlu0 %v524, %s537
      %v539 = vpop.permute.xlu0 %538
      %v540 = vmul.f32 %v258, %v527
      %v541 = vmul.f32 %v259, %v527
      %v542 = vmul.f32 %v260, %v531
      %v543 = vmul.f32 %v261, %v531
      %v544 = vmul.f32 %v262, %v535
      %v545 = vmul.f32 %v263, %v535
      %v546 = vmul.f32 %v264, %v539
      %v547 = vmul.f32 %v265, %v539
      %v548 = vlaneseq
      %v549 = vshrl.u32 %v548, 7
      %v550 = vsub.s32 1, %v549
      %v551 = vrot.slane %v520, %v550
      %553 = vbcast.lane.b32.xlu0 %v551, 256
      %v554 = vpop.permute.xlu0 %553
      %s556 = sor.u32 256, 8
      %557 = vbcast.lane.b32.xlu0 %v551, %s556
      %v558 = vpop.permute.xlu0 %557
      %s560 = sor.u32 256, 16
      %561 = vbcast.lane.b32.xlu0 %v551, %s560
      %v562 = vpop.permute.xlu0 %561
      %s564 = sor.u32 256, 24
      %565 = vbcast.lane.b32.xlu0 %v551, %s564
      %v566 = vpop.permute.xlu0 %565
      %v567 = vmul.f32 %v266, %v554
      %v568 = vmul.f32 %v267, %v554
      %v569 = vmul.f32 %v268, %v558
      %v570 = vmul.f32 %v269, %v558
      %v571 = vmul.f32 %v270, %v562
      %v572 = vmul.f32 %v271, %v562
      %v573 = vmul.f32 %v272, %v566
      %v574 = vmul.f32 %v273, %v566
      %v575 = vmax.f32 %v540, %v541
      %576 = vmax.xlane.f32.xlu0 %v575
      %v577 = vpop.xlane.xlu0 %576
      %v578 = vmax.f32 %v542, %v543
      %579 = vmax.xlane.f32.xlu0 %v578
      %v580 = vpop.xlane.xlu0 %579
      %v581 = vmax.f32 %v544, %v545
      %582 = vmax.xlane.f32.xlu0 %v581
      %v583 = vpop.xlane.xlu0 %582
      %v584 = vmax.f32 %v546, %v547
      %585 = vmax.xlane.f32.xlu0 %v584
      %v586 = vpop.xlane.xlu0 %585
      %v587 = vxor.u32 %v577, 2147483648
      %v588 = vxor.u32 %v580, 2147483648
      %v589 = vxor.u32 %v583, 2147483648
      %v590 = vxor.u32 %v586, 2147483648
      %v591 = vmul.f32 %v587, 1.442695
      %v592 = vpow.pop %v591
      %v593 = vmul.f32 %v588, 1.442695
      %v594 = vpow.pop %v593
      %v595 = vmul.f32 %v589, 1.442695
      %v596 = vpow.pop %v595
      %v597 = vmul.f32 %v590, 1.442695
      %v598 = vpow.pop %v597
      %v599 = vadd.f32 %v592, 1.0
      %v600 = vadd.f32 %v594, 1.0
      %v601 = vadd.f32 %v596, 1.0
      %v602 = vadd.f32 %v598, 1.0
      %v603 = vrcp.pop %v599
      %v604 = vmul.f32 1.0, %v603
      %v605 = vrcp.pop %v600
      %v606 = vmul.f32 1.0, %v605
      %v607 = vrcp.pop %v601
      %v608 = vmul.f32 1.0, %v607
      %v609 = vrcp.pop %v602
      %v610 = vmul.f32 1.0, %v609
      %v611 = vmax.f32 %v567, %v568
      %612 = vmax.xlane.f32.xlu0 %v611
      %v613 = vpop.xlane.xlu0 %612
      %v614 = vmax.f32 %v569, %v570
      %615 = vmax.xlane.f32.xlu0 %v614
      %v616 = vpop.xlane.xlu0 %615
      %v617 = vmax.f32 %v571, %v572
      %618 = vmax.xlane.f32.xlu0 %v617
      %v619 = vpop.xlane.xlu0 %618
      %v620 = vmax.f32 %v573, %v574
      %621 = vmax.xlane.f32.xlu0 %v620
      %v622 = vpop.xlane.xlu0 %621
      %v623 = vxor.u32 %v613, 2147483648
      %v624 = vxor.u32 %v616, 2147483648
      %v625 = vxor.u32 %v619, 2147483648
      %v626 = vxor.u32 %v622, 2147483648
      %v627 = vmul.f32 %v623, 1.442695
      %v628 = vpow.pop %v627
      %v629 = vmul.f32 %v624, 1.442695
      %v630 = vpow.pop %v629
      %v631 = vmul.f32 %v625, 1.442695
      %v632 = vpow.pop %v631
      %v633 = vmul.f32 %v626, 1.442695
      %v634 = vpow.pop %v633
      %v635 = vadd.f32 %v628, 1.0
      %v636 = vadd.f32 %v630, 1.0
      %v637 = vadd.f32 %v632, 1.0
      %v638 = vadd.f32 %v634, 1.0
      %v639 = vrcp.pop %v635
      %v640 = vmul.f32 1.0, %v639
      %v641 = vrcp.pop %v636
      %v642 = vmul.f32 1.0, %v641
      %v643 = vrcp.pop %v637
      %v644 = vmul.f32 1.0, %v643
      %v645 = vrcp.pop %v638
      %v646 = vmul.f32 1.0, %v645
      %v647 = vmul.f32 %v540, %v640
      %v648 = vmul.f32 %v541, %v640
      %v649 = vmul.f32 %v542, %v642
      %v650 = vmul.f32 %v543, %v642
      %v651 = vmul.f32 %v544, %v644
      %v652 = vmul.f32 %v545, %v644
      %v653 = vmul.f32 %v546, %v646
      %v654 = vmul.f32 %v547, %v646
      %v655 = vadd.f32 %v258, %v647
      %v656 = vadd.f32 %v259, %v648
      %v657 = vadd.f32 %v260, %v649
      %v658 = vadd.f32 %v261, %v650
      %v659 = vadd.f32 %v262, %v651
      %v660 = vadd.f32 %v263, %v652
      %v661 = vadd.f32 %v264, %v653
      %v662 = vadd.f32 %v265, %v654
      %663 = vst [vmem:[%s252] sm:$0xff] %v655
      %664 = vst [vmem:[%s252 + $0x8] sm:$0xff] %v656
      %665 = vst [vmem:[%s252 + $0x10] sm:$0xff] %v657
      %666 = vst [vmem:[%s252 + $0x18] sm:$0xff] %v658
      %667 = vst [vmem:[%s252 + $0x20] sm:$0xff] %v659
      %668 = vst [vmem:[%s252 + $0x28] sm:$0xff] %v660
      %669 = vst [vmem:[%s252 + $0x30] sm:$0xff] %v661
      %670 = vst [vmem:[%s252 + $0x38] sm:$0xff] %v662
      %v671 = vmul.f32 %v567, %v604
      %v672 = vmul.f32 %v568, %v604
      %v673 = vmul.f32 %v569, %v606
      %v674 = vmul.f32 %v570, %v606
      %v675 = vmul.f32 %v571, %v608
      %v676 = vmul.f32 %v572, %v608
      %v677 = vmul.f32 %v573, %v610
      %v678 = vmul.f32 %v574, %v610
      %v679 = vadd.f32 %v266, %v671
      %v680 = vadd.f32 %v267, %v672
      %v681 = vadd.f32 %v268, %v673
      %v682 = vadd.f32 %v269, %v674
      %v683 = vadd.f32 %v270, %v675
      %v684 = vadd.f32 %v271, %v676
      %v685 = vadd.f32 %v272, %v677
      %v686 = vadd.f32 %v273, %v678
      %687 = vst [vmem:[%s257] sm:$0xff] %v679
      %688 = vst [vmem:[%s257 + $0x8] sm:$0xff] %v680
      %689 = vst [vmem:[%s257 + $0x10] sm:$0xff] %v681
      %690 = vst [vmem:[%s257 + $0x18] sm:$0xff] %v682
      %691 = vst [vmem:[%s257 + $0x20] sm:$0xff] %v683
      %692 = vst [vmem:[%s257 + $0x28] sm:$0xff] %v684
      %693 = vst [vmem:[%s257 + $0x30] sm:$0xff] %v685
      %694 = vst [vmem:[%s257 + $0x38] sm:$0xff] %v686
      %p695 = scmp.lt.s32.totalorder %s17, 1
      %s696 = scalar_select %p695, %s17, 1
      %s697 = smul.addr %s696, 8
      %s698 = smul.addr %s697, 8
      %s699 = scalar_lea.vmem %s4, %s698
      %p700 = scmp.lt.s32.totalorder %s17, 1
      %s701 = scalar_select %p700, %s17, 1
      %s702 = smul.addr %s701, 8
      %s703 = smul.addr %s702, 8
      %s704 = scalar_lea.vmem %s5, %s703
      // Predicated region
      $region37: #{mutual_attention.1} parent=35 // pred_check
        %p705 = pneg %p129
      $region38: #{mutual_attention.1} parent=35 // pred_check_branch
        %707 = sbr.rel (%p705) target = $region40
      $region39: #{mutual_attention.1} parent=35 // pred_region
        _
      $region40: #{mutual_attention.1} parent=35 // pred_fallthru
        _
      // Predicated region
      $region41: #{mutual_attention.1} parent=35 // pred_check
        %p708 = pneg %p155
      $region42: #{mutual_attention.1} parent=35 // pred_check_branch
        %710 = sbr.rel (%p708) target = $region44
      $region43: #{mutual_attention.1} parent=35 // pred_region
        _
      $region44: #{mutual_attention.1} parent=35 // pred_fallthru
        _
    $region36: #{mutual_attention.1} parent=5 // pred_fallthru
      _
    %p711 = scmp.le.s32.totalorder 2, %s12
    // Predicated region
    $region45: #{mutual_attention.1} parent=5 // pred_check
      %p712 = pneg %p711
    $region46: #{mutual_attention.1} parent=5 // pred_check_branch
      %714 = sbr.rel (%p712) target = $region48
    $region47: #{mutual_attention.1} parent=5 // pred_region
      %s715 = ssub.s32 %s12, 2
      // Predicated region
      $region49: #{mutual_attention.1} parent=47 // pred_check
        %p716 = pneg %p135
      $region50: #{mutual_attention.1} parent=47 // pred_check_branch
        %718 = sbr.rel (%p716) target = $region52
      $region51: #{mutual_attention.1} parent=47 // pred_region
        %p719 = scmp.lt.s32.totalorder %s18, 1
        %s720 = scalar_select %p719, %s18, 1
        %s721 = smul.addr %s720, 8
        %s722 = smul.addr %s721, 8
        %s723 = scalar_lea.vmem %s4, %s722
      $region52: #{mutual_attention.1} parent=47 // pred_fallthru
        _
      // Predicated region
      $region53: #{mutual_attention.1} parent=47 // pred_check
        %p724 = pneg %p161
      $region54: #{mutual_attention.1} parent=47 // pred_check_branch
        %726 = sbr.rel (%p724) target = $region56
      $region55: #{mutual_attention.1} parent=47 // pred_region
        %p727 = scmp.lt.s32.totalorder %s18, 1
        %s728 = scalar_select %p727, %s18, 1
        %s729 = smul.addr %s728, 8
        %s730 = smul.addr %s729, 8
        %s731 = scalar_lea.vmem %s5, %s730
      $region56: #{mutual_attention.1} parent=47 // pred_fallthru
        _
    $region48: #{mutual_attention.1} parent=5 // pred_fallthru
      _
  $region6: #{mutual_attention.1} parent=0 // loop_footer
    %s16 = sadd.s32 1, %s12
  $region7: #{mutual_attention.1} parent=0 // loop_footer_branch
    %11 = sbr.rel target = $region3
  $region8: #{mutual_attention.1} parent=0 // loop_exit
    _

</llo_original>
